<compile_context>
chip_gen: v6e
topology: v6e:2x2x1
jax: 0.10.0
libtpu: 0.0.40
codegen_flags: <defaults>
</compile_context>

<pallas_src>
import jax
import jax.numpy as jnp
from jax.experimental import pallas as pl
from jax.experimental.pallas import tpu as pltpu

NUM_AUGS = 16          # module default; padding_idx = NUM_AUGS - 1 (init only)
NUM_CLS = 100          # cls_embedding exists in the module but is unused in forward()
EMBED_DIM = 100
LINEAR_HIDDEN = 100

H_PAD = 128            # 100-wide feature dims zero-padded to full lanes
TB_MAX = 1024          # max batch tile (multiple of 8 sublanes)


def _round_up(x, m):
    return (x + m - 1) // m * m


def _pad2(a, rows, cols):
    return jnp.pad(a, ((0, rows - a.shape[0]), (0, cols - a.shape[1])))


def fused_kernel(x0_ref, x1_ref, x2_ref, tw0_ref, b0_ref, w1_ref, b1_ref,
                 w2_ref, b2_ref, w3_ref, b3_ref, out_ref):
    tb = x0_ref.shape[0]
    lane_ids = jax.lax.broadcasted_iota(jnp.int32, (tb, NUM_AUGS), 1)

    # Fused embedding gather: counts[b, k] = #{c in {0,1,2} : x[b, c] == k}.
    # Each index column is (tb, 1) -> cheap lane-0 broadcast against lane_ids.
    counts = ((x0_ref[...] == lane_ids).astype(jnp.float32)
              + (x1_ref[...] == lane_ids).astype(jnp.float32)
              + (x2_ref[...] == lane_ids).astype(jnp.float32))

    # (E[x0]+E[x1]+E[x2])/3 @ W0  ==  counts @ ((E/3) @ W0)   (folded on host)
    h = jnp.dot(counts, tw0_ref[...], preferred_element_type=jnp.float32) + b0_ref[...]
    h = jnp.maximum(h, 0.0)
    h = jnp.dot(h, w1_ref[...], preferred_element_type=jnp.float32) + b1_ref[...]
    h = jnp.maximum(h, 0.0)
    h = jnp.dot(h, w2_ref[...], preferred_element_type=jnp.float32) + b2_ref[...]
    h = jnp.maximum(h, 0.0)

    # Final Linear(H, 1): VPU multiply + XLU lane reduce (true output dim is 1);
    # avoids a zero-padded 128-wide MXU pass and a 128-wide output slab.
    out_ref[...] = (jnp.sum(h * w3_ref[...], axis=-1, keepdims=True)
                    + b3_ref[0])


def prepare_padded_params(params):
    """Host-side prep: fold embedding table into the first linear and zero-pad
    every 100-wide dim to 128 (exact: pads are 0)."""
    hp = jax.lax.Precision.HIGHEST
    tw0 = jnp.dot(params["aug_embedding"] / 3.0, params["w0"], precision=hp)  # (16, 100)
    return {
        "tw0": _pad2(tw0, NUM_AUGS, H_PAD),
        "b0": _pad2(params["b0"], 1, H_PAD),
        "w1": _pad2(params["w1"], H_PAD, H_PAD),
        "b1": _pad2(params["b1"], 1, H_PAD),
        "w2": _pad2(params["w2"], H_PAD, H_PAD),
        "b2": _pad2(params["b2"], 1, H_PAD),
        "w3r": _pad2(params["w3"].T, 1, H_PAD),            # (1, 128) row vector
        "b3": params["b3"].reshape(-1).astype(jnp.float32),  # (1,) SMEM scalar
    }


@jax.jit
def neural_predictor_forward(x, padded):
    """x: int32 [B, 3]; padded: output of prepare_padded_params."""
    B = x.shape[0]
    b8 = _round_up(B, 8)
    tb = min(TB_MAX, b8)           # large batches: >=2 grid steps (v7x megacore)
    b_pad = _round_up(B, tb)
    grid = (b_pad // tb,)

    x_p = jnp.pad(x.astype(jnp.int32), ((0, b_pad - B), (0, 0)))
    x0, x1, x2 = x_p[:, 0:1], x_p[:, 1:2], x_p[:, 2:3]

    def col_spec():
        return pl.BlockSpec((tb, 1), lambda i: (i, 0))

    def full_spec(shape):
        return pl.BlockSpec(shape, lambda i: (0, 0))

    p = padded
    args = (x0, x1, x2, p["tw0"], p["b0"], p["w1"], p["b1"],
            p["w2"], p["b2"], p["w3r"], p["b3"])

    in_specs = [col_spec(), col_spec(), col_spec(),
                full_spec(p["tw0"].shape), full_spec(p["b0"].shape),
                full_spec(p["w1"].shape), full_spec(p["b1"].shape),
                full_spec(p["w2"].shape), full_spec(p["b2"].shape),
                full_spec(p["w3r"].shape),
                pl.BlockSpec(memory_space=pltpu.MemorySpace.SMEM)]

    flops = b_pad * (2 * NUM_AUGS * H_PAD + 2 * 2 * H_PAD * H_PAD + 3 * H_PAD)
    bytes_accessed = (sum(int(a.size) * a.dtype.itemsize for a in args)
                      + b_pad * 4)

    y_pad = pl.pallas_call(
        fused_kernel,
        grid=grid,
        in_specs=in_specs,
        out_specs=pl.BlockSpec((tb, 1), lambda i: (i, 0)),
        out_shape=jax.ShapeDtypeStruct((b_pad, 1), jnp.float32),
        compiler_params=pltpu.CompilerParams(
            dimension_semantics=("parallel",)),
        cost_estimate=pl.CostEstimate(flops=flops, transcendentals=0,
                                      bytes_accessed=bytes_accessed),
    )(*args)

    return y_pad[:B]


def init_params(key):
    ks = jax.random.split(key, 10)

    def linear(kw, kb, fan_in, fan_out):
        bound = 1.0 / (fan_in ** 0.5)
        w = jax.random.uniform(kw, (fan_in, fan_out), jnp.float32, -bound, bound)
        b = jax.random.uniform(kb, (1, fan_out), jnp.float32, -bound, bound)
        return w, b

    # nn.Embedding default init ~ N(0, 1); padding_idx row zeroed (init-time only).
    aug_tab = jax.random.normal(ks[0], (NUM_AUGS, EMBED_DIM), jnp.float32)
    aug_tab = aug_tab.at[NUM_AUGS - 1].set(0.0)
    cls_tab = jax.random.normal(ks[1], (NUM_CLS, EMBED_DIM), jnp.float32)  # unused in forward

    params = {"aug_embedding": aug_tab, "cls_embedding": cls_tab}
    params["w0"], params["b0"] = linear(ks[2], ks[3], EMBED_DIM, LINEAR_HIDDEN)
    params["w1"], params["b1"] = linear(ks[4], ks[5], LINEAR_HIDDEN, LINEAR_HIDDEN)
    params["w2"], params["b2"] = linear(ks[6], ks[7], LINEAR_HIDDEN, LINEAR_HIDDEN)
    params["w3"], params["b3"] = linear(ks[8], ks[9], LINEAR_HIDDEN, 1)
    return params


def reference_forward(x, params):
    """Pure-JAX reference mirroring the PyTorch forward exactly (unpadded, unfolded)."""
    hp = jax.lax.Precision.HIGHEST
    tab = params["aug_embedding"]
    e = (tab[x[:, 0]] + tab[x[:, 1]] + tab[x[:, 2]]) / 3.0
    h = jnp.maximum(jnp.dot(e, params["w0"], precision=hp) + params["b0"], 0.0)
    h = jnp.maximum(jnp.dot(h, params["w1"], precision=hp) + params["b1"], 0.0)
    h = jnp.maximum(jnp.dot(h, params["w2"], precision=hp) + params["b2"], 0.0)
    return jnp.dot(h, params["w3"], precision=hp) + params["b3"]


if __name__ == "__main__":
    key = jax.random.PRNGKey(0)
    pkey, xkey1, xkey2 = jax.random.split(key, 3)
    params = init_params(pkey)
    padded = prepare_padded_params(params)

    # Small smoke test (single tile) and a multi-tile test (exercises the
    # padded, tiled batch grid).
    for B, xkey in ((8, xkey1), (2500, xkey2)):
        x = jax.random.randint(xkey, (B, 3), 0, NUM_AUGS, dtype=jnp.int32)  # (B, 3)
        y = neural_predictor_forward(x, padded)
        jax.block_until_ready(y)

        y_ref = reference_forward(x, params)
        assert y.shape == (B, 1)
        assert jnp.allclose(y, y_ref, atol=1e-3, rtol=1e-3), f"mismatch vs reference at B={B}"

    print("KERNEL_OK")
</pallas_src>

<mosaic_0001>
module attributes {stable_mosaic.version = 11 : i64} {
  func.func @fused_kernel(%arg0: i32, %arg1: memref<8x1xi32, #tpu.memory_space<vmem>>, %arg2: memref<8x1xi32, #tpu.memory_space<vmem>>, %arg3: memref<8x1xi32, #tpu.memory_space<vmem>>, %arg4: memref<16x128xf32, #tpu.memory_space<vmem>>, %arg5: memref<1x128xf32, #tpu.memory_space<vmem>>, %arg6: memref<128x128xf32, #tpu.memory_space<vmem>>, %arg7: memref<1x128xf32, #tpu.memory_space<vmem>>, %arg8: memref<128x128xf32, #tpu.memory_space<vmem>>, %arg9: memref<1x128xf32, #tpu.memory_space<vmem>>, %arg10: memref<1x128xf32, #tpu.memory_space<vmem>>, %arg11: memref<1xf32, #tpu.memory_space<smem>>, %arg12: memref<8x1xf32, #tpu.memory_space<vmem>>) attributes {dimension_semantics = [#tpu.dimension_semantics<parallel>], iteration_bounds = array<i64: 1>, scalar_prefetch = 0 : i64, scratch_operands = 0 : i64, tpu.core_type = #tpu.core_type<tc>, window_params = [{transform_indices = @transform_0, window_bounds = array<i64: 8, 1>}, {transform_indices = @transform_1, window_bounds = array<i64: 8, 1>}, {transform_indices = @transform_2, window_bounds = array<i64: 8, 1>}, {pipeline_mode = #tpu.pipeline_mode<synchronous>, transform_indices = @transform_3, window_bounds = array<i64: 16, 128>}, {pipeline_mode = #tpu.pipeline_mode<synchronous>, transform_indices = @transform_4, window_bounds = array<i64: 1, 128>}, {pipeline_mode = #tpu.pipeline_mode<synchronous>, transform_indices = @transform_5, window_bounds = array<i64: 128, 128>}, {pipeline_mode = #tpu.pipeline_mode<synchronous>, transform_indices = @transform_6, window_bounds = array<i64: 1, 128>}, {pipeline_mode = #tpu.pipeline_mode<synchronous>, transform_indices = @transform_7, window_bounds = array<i64: 128, 128>}, {pipeline_mode = #tpu.pipeline_mode<synchronous>, transform_indices = @transform_8, window_bounds = array<i64: 1, 128>}, {pipeline_mode = #tpu.pipeline_mode<synchronous>, transform_indices = @transform_9, window_bounds = array<i64: 1, 128>}, {transform_indices = @transform_10, window_bounds = array<i64: 1>}, {transform_indices = @transform_11, window_bounds = array<i64: 8, 1>}]} {
    %0 = tpu.iota {dimensions = array<i32: 1>} : vector<8x16xi32>
    %c0 = arith.constant 0 : index
    %c0_0 = arith.constant 0 : index
    %1 = vector.load %arg1[%c0, %c0_0] : memref<8x1xi32, #tpu.memory_space<vmem>>, vector<8x1xi32>
    %2 = vector.broadcast %1 : vector<8x1xi32> to vector<8x16xi32>
    %3 = arith.cmpi eq, %2, %0 : vector<8x16xi32>
    %4 = arith.extui %3 : vector<8x16xi1> to vector<8x16xi32>
    %5 = arith.sitofp %4 : vector<8x16xi32> to vector<8x16xf32>
    %c0_1 = arith.constant 0 : index
    %c0_2 = arith.constant 0 : index
    %6 = vector.load %arg2[%c0_1, %c0_2] : memref<8x1xi32, #tpu.memory_space<vmem>>, vector<8x1xi32>
    %7 = vector.broadcast %6 : vector<8x1xi32> to vector<8x16xi32>
    %8 = arith.cmpi eq, %7, %0 : vector<8x16xi32>
    %9 = arith.extui %8 : vector<8x16xi1> to vector<8x16xi32>
    %10 = arith.sitofp %9 : vector<8x16xi32> to vector<8x16xf32>
    %11 = arith.addf %5, %10 : vector<8x16xf32>
    %c0_3 = arith.constant 0 : index
    %c0_4 = arith.constant 0 : index
    %12 = vector.load %arg3[%c0_3, %c0_4] : memref<8x1xi32, #tpu.memory_space<vmem>>, vector<8x1xi32>
    %13 = vector.broadcast %12 : vector<8x1xi32> to vector<8x16xi32>
    %14 = arith.cmpi eq, %13, %0 : vector<8x16xi32>
    %15 = arith.extui %14 : vector<8x16xi1> to vector<8x16xi32>
    %16 = arith.sitofp %15 : vector<8x16xi32> to vector<8x16xf32>
    %17 = arith.addf %11, %16 : vector<8x16xf32>
    %c0_5 = arith.constant 0 : index
    %c0_6 = arith.constant 0 : index
    %18 = vector.load %arg4[%c0_5, %c0_6] : memref<16x128xf32, #tpu.memory_space<vmem>>, vector<16x128xf32>
    %cst = arith.constant dense<0.000000e+00> : vector<8x128xf32>
    %19 = tpu.matmul %17, %18, %cst {dimension_numbers = #tpu.dot_dimension_numbers<[1], [0], [0], [1], [0, 0, 1, 1], [], []>} : vector<8x16xf32>, vector<16x128xf32>, vector<8x128xf32> -> vector<8x128xf32>
    %c0_7 = arith.constant 0 : index
    %c0_8 = arith.constant 0 : index
    %20 = vector.load %arg5[%c0_7, %c0_8] : memref<1x128xf32, #tpu.memory_space<vmem>>, vector<1x128xf32>
    %21 = vector.broadcast %20 : vector<1x128xf32> to vector<8x128xf32>
    %22 = arith.addf %19, %21 : vector<8x128xf32>
    %cst_9 = arith.constant 0.000000e+00 : f32
    %23 = vector.broadcast %cst_9 : f32 to vector<8x128xf32>
    %24 = arith.maximumf %22, %23 : vector<8x128xf32>
    %c0_10 = arith.constant 0 : index
    %c0_11 = arith.constant 0 : index
    %25 = vector.load %arg6[%c0_10, %c0_11] : memref<128x128xf32, #tpu.memory_space<vmem>>, vector<128x128xf32>
    %cst_12 = arith.constant dense<0.000000e+00> : vector<8x128xf32>
    %26 = tpu.matmul %24, %25, %cst_12 {dimension_numbers = #tpu.dot_dimension_numbers<[1], [0], [0], [1], [0, 0, 1, 1], [], []>} : vector<8x128xf32>, vector<128x128xf32>, vector<8x128xf32> -> vector<8x128xf32>
    %c0_13 = arith.constant 0 : index
    %c0_14 = arith.constant 0 : index
    %27 = vector.load %arg7[%c0_13, %c0_14] : memref<1x128xf32, #tpu.memory_space<vmem>>, vector<1x128xf32>
    %28 = vector.broadcast %27 : vector<1x128xf32> to vector<8x128xf32>
    %29 = arith.addf %26, %28 : vector<8x128xf32>
    %cst_15 = arith.constant 0.000000e+00 : f32
    %30 = vector.broadcast %cst_15 : f32 to vector<8x128xf32>
    %31 = arith.maximumf %29, %30 : vector<8x128xf32>
    %c0_16 = arith.constant 0 : index
    %c0_17 = arith.constant 0 : index
    %32 = vector.load %arg8[%c0_16, %c0_17] : memref<128x128xf32, #tpu.memory_space<vmem>>, vector<128x128xf32>
    %cst_18 = arith.constant dense<0.000000e+00> : vector<8x128xf32>
    %33 = tpu.matmul %31, %32, %cst_18 {dimension_numbers = #tpu.dot_dimension_numbers<[1], [0], [0], [1], [0, 0, 1, 1], [], []>} : vector<8x128xf32>, vector<128x128xf32>, vector<8x128xf32> -> vector<8x128xf32>
    %c0_19 = arith.constant 0 : index
    %c0_20 = arith.constant 0 : index
    %34 = vector.load %arg9[%c0_19, %c0_20] : memref<1x128xf32, #tpu.memory_space<vmem>>, vector<1x128xf32>
    %35 = vector.broadcast %34 : vector<1x128xf32> to vector<8x128xf32>
    %36 = arith.addf %33, %35 : vector<8x128xf32>
    %cst_21 = arith.constant 0.000000e+00 : f32
    %37 = vector.broadcast %cst_21 : f32 to vector<8x128xf32>
    %38 = arith.maximumf %36, %37 : vector<8x128xf32>
    %c0_22 = arith.constant 0 : index
    %c0_23 = arith.constant 0 : index
    %39 = vector.load %arg10[%c0_22, %c0_23] : memref<1x128xf32, #tpu.memory_space<vmem>>, vector<1x128xf32>
    %40 = vector.broadcast %39 : vector<1x128xf32> to vector<8x128xf32>
    %41 = arith.mulf %38, %40 : vector<8x128xf32>
    %cst_24 = arith.constant dense<0.000000e+00> : vector<8xf32>
    %42 = vector.multi_reduction <add>, %41, %cst_24 [1] : vector<8x128xf32> to vector<8xf32>
    %43 = vector.shape_cast %42 : vector<8xf32> to vector<8x1xf32>
    %c0_25 = arith.constant 0 : index
    %44 = memref.load %arg11[%c0_25] : memref<1xf32, #tpu.memory_space<smem>>
    %45 = vector.broadcast %44 : f32 to vector<8x1xf32>
    %46 = arith.addf %43, %45 : vector<8x1xf32>
    %c0_26 = arith.constant 0 : index
    %c0_27 = arith.constant 0 : index
    %47 = vector.load %arg12[%c0_26, %c0_27] : memref<8x1xf32, #tpu.memory_space<vmem>>, vector<8x1xf32>
    tpu.vector_store %arg12[%c0_26, %c0_27], %46 {strides = array<i32>} : memref<8x1xf32, #tpu.memory_space<vmem>>, vector<8x1xf32>,
    return
  }
  func.func @transform_0(%arg0: i32) -> (i32, i32) {
    %c0_i32 = arith.constant 0 : i32
    %c0_i32_0 = arith.constant 0 : i32
    return %arg0, %c0_i32 : i32, i32
  }
  func.func @transform_1(%arg0: i32) -> (i32, i32) {
    %c0_i32 = arith.constant 0 : i32
    %c0_i32_0 = arith.constant 0 : i32
    return %arg0, %c0_i32 : i32, i32
  }
  func.func @transform_2(%arg0: i32) -> (i32, i32) {
    %c0_i32 = arith.constant 0 : i32
    %c0_i32_0 = arith.constant 0 : i32
    return %arg0, %c0_i32 : i32, i32
  }
  func.func @transform_3(%arg0: i32) -> (i32, i32) {
    %c0_i32 = arith.constant 0 : i32
    %c0_i32_0 = arith.constant 0 : i32
    %c0_i32_1 = arith.constant 0 : i32
    return %c0_i32, %c0_i32_0 : i32, i32
  }
  func.func @transform_4(%arg0: i32) -> (i32, i32) {
    %c0_i32 = arith.constant 0 : i32
    %c0_i32_0 = arith.constant 0 : i32
    %c0_i32_1 = arith.constant 0 : i32
    return %c0_i32, %c0_i32_0 : i32, i32
  }
  func.func @transform_5(%arg0: i32) -> (i32, i32) {
    %c0_i32 = arith.constant 0 : i32
    %c0_i32_0 = arith.constant 0 : i32
    %c0_i32_1 = arith.constant 0 : i32
    return %c0_i32, %c0_i32_0 : i32, i32
  }
  func.func @transform_6(%arg0: i32) -> (i32, i32) {
    %c0_i32 = arith.constant 0 : i32
    %c0_i32_0 = arith.constant 0 : i32
    %c0_i32_1 = arith.constant 0 : i32
    return %c0_i32, %c0_i32_0 : i32, i32
  }
  func.func @transform_7(%arg0: i32) -> (i32, i32) {
    %c0_i32 = arith.constant 0 : i32
    %c0_i32_0 = arith.constant 0 : i32
    %c0_i32_1 = arith.constant 0 : i32
    return %c0_i32, %c0_i32_0 : i32, i32
  }
  func.func @transform_8(%arg0: i32) -> (i32, i32) {
    %c0_i32 = arith.constant 0 : i32
    %c0_i32_0 = arith.constant 0 : i32
    %c0_i32_1 = arith.constant 0 : i32
    return %c0_i32, %c0_i32_0 : i32, i32
  }
  func.func @transform_9(%arg0: i32) -> (i32, i32) {
    %c0_i32 = arith.constant 0 : i32
    %c0_i32_0 = arith.constant 0 : i32
    %c0_i32_1 = arith.constant 0 : i32
    return %c0_i32, %c0_i32_0 : i32, i32
  }
  func.func @transform_10(%arg0: i32) -> i32 {
    %c0_i32 = arith.constant 0 : i32
    %c0_i32_0 = arith.constant 0 : i32
    return %c0_i32 : i32
  }
  func.func @transform_11(%arg0: i32) -> (i32, i32) {
    %c0_i32 = arith.constant 0 : i32
    %c0_i32_0 = arith.constant 0 : i32
    return %arg0, %c0_i32 : i32, i32
  }
}

</mosaic_0001>

<llo_original>
// kernel: neural_predictor_forward.1
$region0: #{neural_predictor_forward.1}
  #allocation0 [shape = 'u32[]', space=smem, size = 0x4, offset = 0x4, fixed_abs, tag = 'smem constant byte address 0x4 - core index']
  #allocation1 [shape = 'u32[144,128]{1,0:T(1,128)}', space=vmem, size = 0x12000, scoped, tag = 'internal scratch']
  #allocation2 [shape = 'f32[1]{0:T(128)S(6)}', space=smem, size = 0x200, scoped, tag = 'scoped memory for neural_predictor_forward.1']
  %s0 = inlined_call_operand.vmem [shape: s32[8,1], index: 0, kind: input, shape index: {}]
  %s1 = inlined_call_operand.vmem [shape: s32[8,1], index: 1, kind: input, shape index: {}]
  %s2 = inlined_call_operand.vmem [shape: s32[8,1], index: 2, kind: input, shape index: {}]
  %s3 = inlined_call_operand.vmem [shape: f32[16,128], index: 3, kind: input, shape index: {}]
  %s4 = inlined_call_operand.vmem [shape: f32[1,128], index: 4, kind: input, shape index: {}]
  %s5 = inlined_call_operand.hbm [shape: f32[128,128], index: 5, kind: input, shape index: {}]
  %s6 = inlined_call_operand.vmem [shape: f32[1,128], index: 6, kind: input, shape index: {}]
  %s7 = inlined_call_operand.hbm [shape: f32[128,128], index: 7, kind: input, shape index: {}]
  %s8 = inlined_call_operand.vmem [shape: f32[1,128], index: 8, kind: input, shape index: {}]
  %s9 = inlined_call_operand.vmem [shape: f32[1,128], index: 9, kind: input, shape index: {}]
  %s10 = inlined_call_operand.<no memory space> [shape: f32[1], index: 10, kind: input, shape index: {}]
  %s11 = inlined_call_operand.vmem [shape: f32[8,1], index: 11, kind: output, shape index: {}]
  %s12 = sld [smem:[#allocation0]]
  $region62: #{neural_predictor_forward.1} parent=0
    _
  %s14 = ssub.s32 1, %s12
  %s15 = scalar_select 0, %s14, %s12
  %16 = sst [smem:[#allocation2]] %s10
  $region1: #{neural_predictor_forward.1} parent=0
    #allocation3 [shape = 'u8[65536]{0}', space=vmem, size = 0x10000, scoped, tag = 'input window, operand 5, single buffered']
    #allocation4 [shape = 's32[1]{0}', space=sflag, size = 0x4, scoped, tag = 'scoped memory for neural_predictor_forward.1']
    #allocation5 [shape = 'u8[65536]{0}', space=vmem, size = 0x10000, scoped, tag = 'input window, operand 7, single buffered']
    #allocation6 [shape = 's32[1]{0}', space=sflag, size = 0x4, scoped, tag = 'scoped memory for neural_predictor_forward.1']
    %17 = vsyncpa [#allocation4], 0
    %18 = vsyncpa [#allocation6], 0
    // Predicated region
    $region2: #{neural_predictor_forward.1} parent=1 // pred_check
      _
    $region3: #{neural_predictor_forward.1} parent=1 // pred_check_branch
      %20 = sbr.rel (0) target = $region5
    $region4: #{neural_predictor_forward.1} parent=1 // pred_region
      _
    $region5: #{neural_predictor_forward.1} parent=1 // pred_fallthru
      _
    // Predicated region
    $region6: #{neural_predictor_forward.1} parent=1 // pred_check
      _
    $region7: #{neural_predictor_forward.1} parent=1 // pred_check_branch
      %22 = sbr.rel (0) target = $region9
    $region8: #{neural_predictor_forward.1} parent=1 // pred_region
      _
    $region9: #{neural_predictor_forward.1} parent=1 // pred_fallthru
      _
    // Predicated region
    $region10: #{neural_predictor_forward.1} parent=1 // pred_check
      _
    $region11: #{neural_predictor_forward.1} parent=1 // pred_check_branch
      %24 = sbr.rel (0) target = $region13
    $region12: #{neural_predictor_forward.1} parent=1 // pred_region
      _
    $region13: #{neural_predictor_forward.1} parent=1 // pred_fallthru
      _
    // Predicated region
    $region14: #{neural_predictor_forward.1} parent=1 // pred_check
      _
    $region15: #{neural_predictor_forward.1} parent=1 // pred_check_branch
      %26 = sbr.rel (0) target = $region17
    $region16: #{neural_predictor_forward.1} parent=1 // pred_region
      _
    $region17: #{neural_predictor_forward.1} parent=1 // pred_fallthru
      _
    // Predicated region
    $region18: #{neural_predictor_forward.1} parent=1 // pred_check
      _
    $region19: #{neural_predictor_forward.1} parent=1 // pred_check_branch
      %28 = sbr.rel (0) target = $region21
    $region20: #{neural_predictor_forward.1} parent=1 // pred_region
      _
    $region21: #{neural_predictor_forward.1} parent=1 // pred_fallthru
      _
    // Predicated region
    $region22: #{neural_predictor_forward.1} parent=1 // pred_check
      _
    $region23: #{neural_predictor_forward.1} parent=1 // pred_check_branch
      %30 = sbr.rel (0) target = $region25
    $region24: #{neural_predictor_forward.1} parent=1 // pred_region
      %s32 = ssub.s32 2048, 2048
      %33 = vsyncadd [#allocation4], %s32
      %s34 = sshll.u32 [#allocation3], 4
      %s35 = int_to_ptr.vmem [resolvable:$true] %s34
      %40 = dma.hbm_to_vmem [thread:$0]  %s5, 2048, %s35, [#allocation4], 128, 128, 8
    $region25: #{neural_predictor_forward.1} parent=1 // pred_fallthru
      _
    // Predicated region
    $region26: #{neural_predictor_forward.1} parent=1 // pred_check
      _
    $region27: #{neural_predictor_forward.1} parent=1 // pred_check_branch
      %42 = sbr.rel (0) target = $region29
    $region28: #{neural_predictor_forward.1} parent=1 // pred_region
      _
    $region29: #{neural_predictor_forward.1} parent=1 // pred_fallthru
      _
    // Predicated region
    $region30: #{neural_predictor_forward.1} parent=1 // pred_check
      _
    $region31: #{neural_predictor_forward.1} parent=1 // pred_check_branch
      %44 = sbr.rel (0) target = $region33
    $region32: #{neural_predictor_forward.1} parent=1 // pred_region
      %s46 = ssub.s32 2048, 2048
      %47 = vsyncadd [#allocation6], %s46
      %s48 = sshll.u32 [#allocation5], 4
      %s49 = int_to_ptr.vmem [resolvable:$true] %s48
      %54 = dma.hbm_to_vmem [thread:$0]  %s7, 2048, %s49, [#allocation6], 128, 128, 8
    $region33: #{neural_predictor_forward.1} parent=1 // pred_fallthru
      _
    // Predicated region
    $region34: #{neural_predictor_forward.1} parent=1 // pred_check
      _
    $region35: #{neural_predictor_forward.1} parent=1 // pred_check_branch
      %56 = sbr.rel (0) target = $region37
    $region36: #{neural_predictor_forward.1} parent=1 // pred_region
      _
    $region37: #{neural_predictor_forward.1} parent=1 // pred_fallthru
      _
    // Predicated region
    $region38: #{neural_predictor_forward.1} parent=1 // pred_check
      _
    $region39: #{neural_predictor_forward.1} parent=1 // pred_check_branch
      %58 = sbr.rel (0) target = $region41
    $region40: #{neural_predictor_forward.1} parent=1 // pred_region
      _
    $region41: #{neural_predictor_forward.1} parent=1 // pred_fallthru
      _
    // Predicated region
    $region42: #{neural_predictor_forward.1} parent=1 // pred_check
      _
    $region43: #{neural_predictor_forward.1} parent=1 // pred_check_branch
      %60 = sbr.rel (0) target = $region45
    $region44: #{neural_predictor_forward.1} parent=1 // pred_region
      _
    $region45: #{neural_predictor_forward.1} parent=1 // pred_fallthru
      _
    // Predicated region
    $region46: #{neural_predictor_forward.1} parent=1 // pred_check
      _
    $region47: #{neural_predictor_forward.1} parent=1 // pred_check_branch
      %62 = sbr.rel (0) target = $region49
    $region48: #{neural_predictor_forward.1} parent=1 // pred_region
      %63 = dma.done [#allocation4], 2048
    $region49: #{neural_predictor_forward.1} parent=1 // pred_fallthru
      _
    // Predicated region
    $region50: #{neural_predictor_forward.1} parent=1 // pred_check
      _
    $region51: #{neural_predictor_forward.1} parent=1 // pred_check_branch
      %65 = sbr.rel (0) target = $region53
    $region52: #{neural_predictor_forward.1} parent=1 // pred_region
      %66 = dma.done [#allocation6], 2048
    $region53: #{neural_predictor_forward.1} parent=1 // pred_fallthru
      _
    %v67 = vlaneseq
    %v68 = vand.u32 %v67, 127
    %v69 = vld [vmem:[%s0] sm:$0xff]
    %70 = vset.pattern.permute.xlu0 0
    %71 = vperm.xlu0 %70, %v69
    %v72 = vpop.permute.xlu0 %71
    %vm73 = vcmp.eq.s32.totalorder %v72, %v68
    %v74 = vsel %vm73, 1, 0
    %v75 = vcvt.s32.f32 %v74
    %v76 = vld [vmem:[%s1] sm:$0xff]
    %77 = vset.pattern.permute.xlu0 0
    %78 = vperm.xlu0 %77, %v76
    %v79 = vpop.permute.xlu0 %78
    %vm80 = vcmp.eq.s32.totalorder %v79, %v68
    %v81 = vsel %vm80, 1, 0
    %v82 = vcvt.s32.f32 %v81
    %v83 = vadd.f32 %v75, %v82
    %v84 = vld [vmem:[%s2] sm:$0xff]
    %85 = vset.pattern.permute.xlu0 0
    %86 = vperm.xlu0 %85, %v84
    %v87 = vpop.permute.xlu0 %86
    %vm88 = vcmp.eq.s32.totalorder %v87, %v68
    %v89 = vsel %vm88, 1, 0
    %v90 = vcvt.s32.f32 %v89
    %v91 = vadd.f32 %v83, %v90
    %v92 = vld [vmem:[%s3] sm:$0xff]
    %v93 = vld [vmem:[%s3 + $0x8] sm:$0xff]
    %v94 = vld [vmem:[%s4] sm:$0x1]
    %v96 = vlaneseq
    %v97 = vshrl.u32 %v96, 7
    %v98 = vsub.s32 0, %v97
    %v99 = vrot.slane %v94, %v98
    %vm101 = vcmask 130048
    %v103 = vsel %vm101, %v91, 0
    %105 = vmatprep.subr.mxu0 0.0
    %106 = vmatpush1.msra.mxu0 0.0
    %107 = vmatprep.subr.mxu0 0.0
    %108 = vmatpush1.msra.mxu0 0.0
    %109 = vmatprep.subr.mxu0 0.0
    %110 = vmatpush1.msra.mxu0 0.0
    %111 = vmatprep.subr.mxu0 0.0
    %112 = vmatpush1.msra.mxu0 0.0
    %113 = vmatprep.subr.mxu0 0.0
    %114 = vmatpush1.msra.mxu0 0.0
    %115 = vmatprep.subr.mxu0 0.0
    %116 = vmatpush1.msra.mxu0 0.0
    %117 = vmatprep.subr.mxu0 0.0
    %118 = vmatpush1.msra.mxu0 0.0
    %119 = vmatprep.subr.mxu0 0.0
    %120 = vmatpush1.msra.mxu0 0.0
    %121 = vmatprep.subr.mxu0 0.0
    %122 = vmatpush1.msra.mxu0 0.0
    %123 = vmatprep.subr.mxu0 0.0
    %124 = vmatpush1.msra.mxu0 0.0
    %125 = vmatprep.subr.mxu0 0.0
    %126 = vmatpush1.msra.mxu0 0.0
    %127 = vmatprep.subr.mxu0 0.0
    %128 = vmatpush1.msra.mxu0 0.0
    %129 = vmatprep.subr.mxu0 0.0
    %130 = vmatpush1.msra.mxu0 0.0
    %131 = vmatprep.subr.mxu0 0.0
    %132 = vmatpush1.msra.mxu0 0.0
    %133 = vmatprep.subr.mxu0 0.0
    %134 = vmatpush1.msra.mxu0 %v93
    %135 = vmatprep.subr.mxu0 0.0
    %136 = vmatpush1.msra.mxu0 %v92
    %137 = vmatprep.subr.mxu0 0.0
    %138 = vmatpush2.msra.mxu0 0.0
    %139 = vmatprep.subr.mxu0 0.0
    %140 = vmatpush2.msra.mxu0 0.0
    %141 = vmatprep.subr.mxu0 0.0
    %142 = vmatpush2.msra.mxu0 0.0
    %143 = vmatprep.subr.mxu0 0.0
    %144 = vmatpush2.msra.mxu0 0.0
    %145 = vmatprep.subr.mxu0 0.0
    %146 = vmatpush2.msra.mxu0 0.0
    %147 = vmatprep.subr.mxu0 0.0
    %148 = vmatpush2.msra.mxu0 0.0
    %149 = vmatprep.subr.mxu0 0.0
    %150 = vmatpush2.msra.mxu0 0.0
    %151 = vmatprep.subr.mxu0 0.0
    %152 = vmatpush2.msra.mxu0 0.0
    %153 = vmatprep.subr.mxu0 0.0
    %154 = vmatpush2.msra.mxu0 0.0
    %155 = vmatprep.subr.mxu0 0.0
    %156 = vmatpush2.msra.mxu0 0.0
    %157 = vmatprep.subr.mxu0 0.0
    %158 = vmatpush2.msra.mxu0 0.0
    %159 = vmatprep.subr.mxu0 0.0
    %160 = vmatpush2.msra.mxu0 0.0
    %161 = vmatprep.subr.mxu0 0.0
    %162 = vmatpush2.msra.mxu0 0.0
    %163 = vmatprep.subr.mxu0 0.0
    %164 = vmatpush2.msra.mxu0 0.0
    %165 = vmatprep.subr.mxu0 0.0
    %166 = vmatpush2.msra.mxu0 0.0
    %167 = vmatprep.subr.mxu0 0.0
    %168 = vmatpush2.msra.mxu0 0.0
    %169 = vmatprep.mubr.f32.mxu0 0.0
    %170 = vmatmul.mubr.f32.gmra.mxu0 %v103
    %v171 = vpop.f32.mrf.mxu0
    %v172 = vadd.f32 %v99, %v171
    %v173 = vpop.f32.mrf.mxu0
    %174 = vdwg.mxu0
    %v175 = vmax.f32 %v172, 0.0
    %v176 = vld [vmem:[#allocation3] sm:$0xff]
    %v177 = vld [vmem:[#allocation3 + $0x8] sm:$0xff]
    %v178 = vld [vmem:[#allocation3 + $0x10] sm:$0xff]
    %v179 = vld [vmem:[#allocation3 + $0x18] sm:$0xff]
    %v180 = vld [vmem:[#allocation3 + $0x20] sm:$0xff]
    %v181 = vld [vmem:[#allocation3 + $0x28] sm:$0xff]
    %v182 = vld [vmem:[#allocation3 + $0x30] sm:$0xff]
    %v183 = vld [vmem:[#allocation3 + $0x38] sm:$0xff]
    %v184 = vld [vmem:[#allocation3 + $0x40] sm:$0xff]
    %v185 = vld [vmem:[#allocation3 + $0x48] sm:$0xff]
    %v186 = vld [vmem:[#allocation3 + $0x50] sm:$0xff]
    %v187 = vld [vmem:[#allocation3 + $0x58] sm:$0xff]
    %v188 = vld [vmem:[#allocation3 + $0x60] sm:$0xff]
    %v189 = vld [vmem:[#allocation3 + $0x68] sm:$0xff]
    %v190 = vld [vmem:[#allocation3 + $0x70] sm:$0xff]
    %v191 = vld [vmem:[#allocation3 + $0x78] sm:$0xff]
    %v192 = vld [vmem:[%s6] sm:$0x1]
    %v194 = vlaneseq
    %v195 = vshrl.u32 %v194, 7
    %v196 = vsub.s32 0, %v195
    %v197 = vrot.slane %v192, %v196
    %199 = vmatprep.subr.mxu0 0.0
    %200 = vmatpush1.msra.mxu0 %v191
    %201 = vmatprep.subr.mxu0 0.0
    %202 = vmatpush1.msra.mxu0 %v190
    %203 = vmatprep.subr.mxu0 0.0
    %204 = vmatpush1.msra.mxu0 %v189
    %205 = vmatprep.subr.mxu0 0.0
    %206 = vmatpush1.msra.mxu0 %v188
    %207 = vmatprep.subr.mxu0 0.0
    %208 = vmatpush1.msra.mxu0 %v187
    %209 = vmatprep.subr.mxu0 0.0
    %210 = vmatpush1.msra.mxu0 %v186
    %211 = vmatprep.subr.mxu0 0.0
    %212 = vmatpush1.msra.mxu0 %v185
    %213 = vmatprep.subr.mxu0 0.0
    %214 = vmatpush1.msra.mxu0 %v184
    %215 = vmatprep.subr.mxu0 0.0
    %216 = vmatpush1.msra.mxu0 %v183
    %217 = vmatprep.subr.mxu0 0.0
    %218 = vmatpush1.msra.mxu0 %v182
    %219 = vmatprep.subr.mxu0 0.0
    %220 = vmatpush1.msra.mxu0 %v181
    %221 = vmatprep.subr.mxu0 0.0
    %222 = vmatpush1.msra.mxu0 %v180
    %223 = vmatprep.subr.mxu0 0.0
    %224 = vmatpush1.msra.mxu0 %v179
    %225 = vmatprep.subr.mxu0 0.0
    %226 = vmatpush1.msra.mxu0 %v178
    %227 = vmatprep.subr.mxu0 0.0
    %228 = vmatpush1.msra.mxu0 %v177
    %229 = vmatprep.subr.mxu0 0.0
    %230 = vmatpush1.msra.mxu0 %v176
    %231 = vmatprep.subr.mxu0 0.0
    %232 = vmatpush2.msra.mxu0 0.0
    %233 = vmatprep.subr.mxu0 0.0
    %234 = vmatpush2.msra.mxu0 0.0
    %235 = vmatprep.subr.mxu0 0.0
    %236 = vmatpush2.msra.mxu0 0.0
    %237 = vmatprep.subr.mxu0 0.0
    %238 = vmatpush2.msra.mxu0 0.0
    %239 = vmatprep.subr.mxu0 0.0
    %240 = vmatpush2.msra.mxu0 0.0
    %241 = vmatprep.subr.mxu0 0.0
    %242 = vmatpush2.msra.mxu0 0.0
    %243 = vmatprep.subr.mxu0 0.0
    %244 = vmatpush2.msra.mxu0 0.0
    %245 = vmatprep.subr.mxu0 0.0
    %246 = vmatpush2.msra.mxu0 0.0
    %247 = vmatprep.subr.mxu0 0.0
    %248 = vmatpush2.msra.mxu0 0.0
    %249 = vmatprep.subr.mxu0 0.0
    %250 = vmatpush2.msra.mxu0 0.0
    %251 = vmatprep.subr.mxu0 0.0
    %252 = vmatpush2.msra.mxu0 0.0
    %253 = vmatprep.subr.mxu0 0.0
    %254 = vmatpush2.msra.mxu0 0.0
    %255 = vmatprep.subr.mxu0 0.0
    %256 = vmatpush2.msra.mxu0 0.0
    %257 = vmatprep.subr.mxu0 0.0
    %258 = vmatpush2.msra.mxu0 0.0
    %259 = vmatprep.subr.mxu0 0.0
    %260 = vmatpush2.msra.mxu0 0.0
    %261 = vmatprep.subr.mxu0 0.0
    %262 = vmatpush2.msra.mxu0 0.0
    %263 = vmatprep.mubr.f32.mxu0 0.0
    %264 = vmatmul.mubr.f32.gmra.mxu0 %v175
    %v265 = vpop.f32.mrf.mxu0
    %v266 = vadd.f32 %v197, %v265
    %v267 = vpop.f32.mrf.mxu0
    %268 = vdwg.mxu0
    %v269 = vmax.f32 %v266, 0.0
    %v270 = vld [vmem:[#allocation5] sm:$0xff]
    %v271 = vld [vmem:[#allocation5 + $0x8] sm:$0xff]
    %v272 = vld [vmem:[#allocation5 + $0x10] sm:$0xff]
    %v273 = vld [vmem:[#allocation5 + $0x18] sm:$0xff]
    %v274 = vld [vmem:[#allocation5 + $0x20] sm:$0xff]
    %v275 = vld [vmem:[#allocation5 + $0x28] sm:$0xff]
    %v276 = vld [vmem:[#allocation5 + $0x30] sm:$0xff]
    %v277 = vld [vmem:[#allocation5 + $0x38] sm:$0xff]
    %v278 = vld [vmem:[#allocation5 + $0x40] sm:$0xff]
    %v279 = vld [vmem:[#allocation5 + $0x48] sm:$0xff]
    %v280 = vld [vmem:[#allocation5 + $0x50] sm:$0xff]
    %v281 = vld [vmem:[#allocation5 + $0x58] sm:$0xff]
    %v282 = vld [vmem:[#allocation5 + $0x60] sm:$0xff]
    %v283 = vld [vmem:[#allocation5 + $0x68] sm:$0xff]
    %v284 = vld [vmem:[#allocation5 + $0x70] sm:$0xff]
    %v285 = vld [vmem:[#allocation5 + $0x78] sm:$0xff]
    %v286 = vld [vmem:[%s8] sm:$0x1]
    %v288 = vlaneseq
    %v289 = vshrl.u32 %v288, 7
    %v290 = vsub.s32 0, %v289
    %v291 = vrot.slane %v286, %v290
    %293 = vmatprep.subr.mxu0 0.0
    %294 = vmatpush1.msra.mxu0 %v285
    %295 = vmatprep.subr.mxu0 0.0
    %296 = vmatpush1.msra.mxu0 %v284
    %297 = vmatprep.subr.mxu0 0.0
    %298 = vmatpush1.msra.mxu0 %v283
    %299 = vmatprep.subr.mxu0 0.0
    %300 = vmatpush1.msra.mxu0 %v282
    %301 = vmatprep.subr.mxu0 0.0
    %302 = vmatpush1.msra.mxu0 %v281
    %303 = vmatprep.subr.mxu0 0.0
    %304 = vmatpush1.msra.mxu0 %v280
    %305 = vmatprep.subr.mxu0 0.0
    %306 = vmatpush1.msra.mxu0 %v279
    %307 = vmatprep.subr.mxu0 0.0
    %308 = vmatpush1.msra.mxu0 %v278
    %309 = vmatprep.subr.mxu0 0.0
    %310 = vmatpush1.msra.mxu0 %v277
    %311 = vmatprep.subr.mxu0 0.0
    %312 = vmatpush1.msra.mxu0 %v276
    %313 = vmatprep.subr.mxu0 0.0
    %314 = vmatpush1.msra.mxu0 %v275
    %315 = vmatprep.subr.mxu0 0.0
    %316 = vmatpush1.msra.mxu0 %v274
    %317 = vmatprep.subr.mxu0 0.0
    %318 = vmatpush1.msra.mxu0 %v273
    %319 = vmatprep.subr.mxu0 0.0
    %320 = vmatpush1.msra.mxu0 %v272
    %321 = vmatprep.subr.mxu0 0.0
    %322 = vmatpush1.msra.mxu0 %v271
    %323 = vmatprep.subr.mxu0 0.0
    %324 = vmatpush1.msra.mxu0 %v270
    %325 = vmatprep.subr.mxu0 0.0
    %326 = vmatpush2.msra.mxu0 0.0
    %327 = vmatprep.subr.mxu0 0.0
    %328 = vmatpush2.msra.mxu0 0.0
    %329 = vmatprep.subr.mxu0 0.0
    %330 = vmatpush2.msra.mxu0 0.0
    %331 = vmatprep.subr.mxu0 0.0
    %332 = vmatpush2.msra.mxu0 0.0
    %333 = vmatprep.subr.mxu0 0.0
    %334 = vmatpush2.msra.mxu0 0.0
    %335 = vmatprep.subr.mxu0 0.0
    %336 = vmatpush2.msra.mxu0 0.0
    %337 = vmatprep.subr.mxu0 0.0
    %338 = vmatpush2.msra.mxu0 0.0
    %339 = vmatprep.subr.mxu0 0.0
    %340 = vmatpush2.msra.mxu0 0.0
    %341 = vmatprep.subr.mxu0 0.0
    %342 = vmatpush2.msra.mxu0 0.0
    %343 = vmatprep.subr.mxu0 0.0
    %344 = vmatpush2.msra.mxu0 0.0
    %345 = vmatprep.subr.mxu0 0.0
    %346 = vmatpush2.msra.mxu0 0.0
    %347 = vmatprep.subr.mxu0 0.0
    %348 = vmatpush2.msra.mxu0 0.0
    %349 = vmatprep.subr.mxu0 0.0
    %350 = vmatpush2.msra.mxu0 0.0
    %351 = vmatprep.subr.mxu0 0.0
    %352 = vmatpush2.msra.mxu0 0.0
    %353 = vmatprep.subr.mxu0 0.0
    %354 = vmatpush2.msra.mxu0 0.0
    %355 = vmatprep.subr.mxu0 0.0
    %356 = vmatpush2.msra.mxu0 0.0
    %357 = vmatprep.mubr.f32.mxu0 0.0
    %358 = vmatmul.mubr.f32.gmra.mxu0 %v269
    %v359 = vpop.f32.mrf.mxu0
    %v360 = vadd.f32 %v291, %v359
    %v361 = vpop.f32.mrf.mxu0
    %362 = vdwg.mxu0
    %v363 = vmax.f32 %v360, 0.0
    %v364 = vld [vmem:[%s9] sm:$0x1]
    %v366 = vlaneseq
    %v367 = vshrl.u32 %v366, 7
    %v368 = vsub.s32 0, %v367
    %v369 = vrot.slane %v364, %v368
    %v371 = vmul.f32 %v363, %v369
    %372 = vadd.xlane.f32.xlu0 %v371
    %v373 = vpop.xlane.xlu0 %372
    %s374 = sld [smem:[#allocation2]]
    %v375 = vstv %s374
    %v376 = vadd.f32 %v373, %v375
    %vm377 = vcmask 7168
    %378 = vst.msk [vmem:[%s11] sm:$0xff] %vm377, %v376
    // Predicated region
    $region54: #{neural_predictor_forward.1} parent=1 // pred_check
      _
    $region55: #{neural_predictor_forward.1} parent=1 // pred_check_branch
      %380 = sbr.rel (0) target = $region57
    $region56: #{neural_predictor_forward.1} parent=1 // pred_region
      _
    $region57: #{neural_predictor_forward.1} parent=1 // pred_fallthru
      _
    // Predicated region
    $region58: #{neural_predictor_forward.1} parent=1 // pred_check
      _
    $region59: #{neural_predictor_forward.1} parent=1 // pred_check_branch
      %382 = sbr.rel (0) target = $region61
    $region60: #{neural_predictor_forward.1} parent=1 // pred_region
      _
    $region61: #{neural_predictor_forward.1} parent=1 // pred_fallthru
      _
    %383 = vsyncpa [#allocation4], 1
    %384 = vsyncpa [#allocation6], 1

</llo_original>
